<compile_context>
chip_gen: v6e
topology: v6e:2x2x1
jax: 0.10.0
libtpu: 0.0.40
codegen_flags: <defaults>
</compile_context>

<pallas_src>
import functools

import jax
import jax.numpy as jnp
from jax.experimental import pallas as pl
from jax.experimental.pallas import tpu as pltpu


def _round_up(x, m):
    return (x + m - 1) // m * m


def _mlp_kernel(*refs, apply_mask):
    if apply_mask:
        x_ref, mask_ref, w1_ref, b1_ref, w2_ref, b2_ref, o_ref = refs
    else:
        x_ref, w1_ref, b1_ref, w2_ref, b2_ref, o_ref = refs
        mask_ref = None

    # fc1: (TB, IN) @ (IN, HLp) + (1, HLp)  -- weights pre-transposed, no .T
    h = jnp.dot(x_ref[...], w1_ref[...], preferred_element_type=jnp.float32)
    h = h + b1_ref[...]
    h = jnp.maximum(h, jnp.float32(0.0))           # ReLU

    if mask_ref is not None:                       # inverted dropout (training)
        h = h * mask_ref[...]

    # fc2: (TB, HLp) @ (HLp, NCp) + (1, NCp)
    out = jnp.dot(h, w2_ref[...], preferred_element_type=jnp.float32)
    out = out + b2_ref[...]
    o_ref[...] = out.astype(o_ref.dtype)


def net_forward(x, w1, b1, w2, b2, *, dropout_rate=0.5, training=True,
                rng_key=None):
    """Forward pass of Net (matches nn.Linear / nn.Dropout semantics).

    x:  (B, input_size) float
    w1: (hl, input_size), b1: (hl,)
    w2: (n_classes, hl),  b2: (n_classes,)
    rng_key: jax.random.PRNGKey used for the dropout mask when training.
    """
    B, in_size = x.shape
    hl = w1.shape[0]
    nc = w2.shape[0]

    hl_pad = _round_up(hl, 128)      # lane-dense hidden dim
    nc_pad = _round_up(nc, 128)      # lane-dense output dim

    # Batch tile: multiple of 8 sublanes, capped at 512 rows (VMEM budget).
    tb = min(512, _round_up(B, 8))
    b_pad = _round_up(B, tb)
    grid = (b_pad // tb,)

    f32 = jnp.float32
    x_p = jnp.pad(x.astype(f32), ((0, b_pad - B), (0, 0)))
    w1_t = jnp.pad(w1.astype(f32).T, ((0, 0), (0, hl_pad - hl)))
    b1_p = jnp.pad(b1.astype(f32), (0, hl_pad - hl)).reshape(1, hl_pad)
    w2_t = jnp.pad(w2.astype(f32).T, ((0, hl_pad - hl), (0, nc_pad - nc)))
    b2_p = jnp.pad(b2.astype(f32), (0, nc_pad - nc)).reshape(1, nc_pad)

    apply_mask = bool(training) and float(dropout_rate) > 0.0

    args = [x_p]
    in_specs = [pl.BlockSpec((tb, in_size), lambda i: (i, 0))]
    if apply_mask:
        if rng_key is None:
            rng_key = jax.random.PRNGKey(0)
        keep = jax.random.uniform(rng_key, (b_pad, hl_pad), dtype=f32) >= float(dropout_rate)
        mask = keep.astype(f32) * (1.0 / (1.0 - float(dropout_rate)))
        args.append(mask)
        in_specs.append(pl.BlockSpec((tb, hl_pad), lambda i: (i, 0)))
    args += [w1_t, b1_p, w2_t, b2_p]
    in_specs += [
        pl.BlockSpec((in_size, hl_pad), lambda i: (0, 0)),   # resident weights
        pl.BlockSpec((1, hl_pad), lambda i: (0, 0)),
        pl.BlockSpec((hl_pad, nc_pad), lambda i: (0, 0)),
        pl.BlockSpec((1, nc_pad), lambda i: (0, 0)),
    ]

    kernel = functools.partial(_mlp_kernel, apply_mask=apply_mask)

    out_padded = pl.pallas_call(
        kernel,
        out_shape=jax.ShapeDtypeStruct((b_pad, nc_pad), f32),
        grid=grid,
        in_specs=in_specs,
        out_specs=pl.BlockSpec((tb, nc_pad), lambda i: (i, 0)),
        compiler_params=pltpu.CompilerParams(
            dimension_semantics=("parallel",)),
    )(*args)

    return out_padded[:B, :nc]


if __name__ == "__main__":
    key = jax.random.PRNGKey(0)
    k_params, k_x, k_drop = jax.random.split(key, 3)

    batch, input_size, n_classes = 8, 32, 8
    hl_size = (input_size + n_classes) // 2        # 20

    # nn.Linear-style uniform(-1/sqrt(in), 1/sqrt(in)) init.
    k1, k2, k3, k4 = jax.random.split(k_params, 4)
    bound1 = 1.0 / (input_size ** 0.5)
    bound2 = 1.0 / (hl_size ** 0.5)
    w1 = jax.random.uniform(k1, (hl_size, input_size), jnp.float32, -bound1, bound1)
    b1 = jax.random.uniform(k2, (hl_size,), jnp.float32, -bound1, bound1)
    w2 = jax.random.uniform(k3, (n_classes, hl_size), jnp.float32, -bound2, bound2)
    b2 = jax.random.uniform(k4, (n_classes,), jnp.float32, -bound2, bound2)
    x = jax.random.normal(k_x, (batch, input_size), dtype=jnp.float32)

    # Training-mode forward (dropout active).
    out_train = jax.block_until_ready(
        net_forward(x, w1, b1, w2, b2, dropout_rate=0.5, training=True,
                    rng_key=k_drop))
    assert out_train.shape == (batch, n_classes)
    assert out_train.dtype == jnp.float32

    # Check the training path against a pure-JAX reference using the same
    # mask the wrapper generates (b_pad == batch, hl_pad == 128 here).
    hl_pad = _round_up(hl_size, 128)
    keep_ref = jax.random.uniform(k_drop, (batch, hl_pad), dtype=jnp.float32) >= 0.5
    mask_ref = keep_ref.astype(jnp.float32) * 2.0
    h_ref = jnp.maximum(x @ w1.T + b1, 0.0) * mask_ref[:, :hl_size]
    ref_train = h_ref @ w2.T + b2
    assert jnp.allclose(out_train, ref_train, atol=1e-5, rtol=1e-5)

    # Eval-mode forward (dropout is identity) must match the reference.
    out_eval = jax.block_until_ready(
        net_forward(x, w1, b1, w2, b2, dropout_rate=0.5, training=False))
    ref_eval = jnp.maximum(x @ w1.T + b1, 0.0) @ w2.T + b2
    assert jnp.allclose(out_eval, ref_eval, atol=1e-5, rtol=1e-5)

    print("KERNEL_OK")
</pallas_src>

<mosaic_0001>
module attributes {stable_mosaic.version = 11 : i64} {
  func.func @_mlp_kernel(%arg0: i32, %arg1: memref<8x32xf32, #tpu.memory_space<vmem>>, %arg2: memref<8x128xf32, #tpu.memory_space<vmem>>, %arg3: memref<32x128xf32, #tpu.memory_space<vmem>>, %arg4: memref<1x128xf32, #tpu.memory_space<vmem>>, %arg5: memref<128x128xf32, #tpu.memory_space<vmem>>, %arg6: memref<1x128xf32, #tpu.memory_space<vmem>>, %arg7: memref<8x128xf32, #tpu.memory_space<vmem>>) attributes {dimension_semantics = [#tpu.dimension_semantics<parallel>], iteration_bounds = array<i64: 1>, scalar_prefetch = 0 : i64, scratch_operands = 0 : i64, tpu.core_type = #tpu.core_type<tc>, window_params = [{transform_indices = @transform_0, window_bounds = array<i64: 8, 32>}, {transform_indices = @transform_1, window_bounds = array<i64: 8, 128>}, {pipeline_mode = #tpu.pipeline_mode<synchronous>, transform_indices = @transform_2, window_bounds = array<i64: 32, 128>}, {pipeline_mode = #tpu.pipeline_mode<synchronous>, transform_indices = @transform_3, window_bounds = array<i64: 1, 128>}, {pipeline_mode = #tpu.pipeline_mode<synchronous>, transform_indices = @transform_4, window_bounds = array<i64: 128, 128>}, {pipeline_mode = #tpu.pipeline_mode<synchronous>, transform_indices = @transform_5, window_bounds = array<i64: 1, 128>}, {transform_indices = @transform_6, window_bounds = array<i64: 8, 128>}]} {
    %c0 = arith.constant 0 : index
    %c0_0 = arith.constant 0 : index
    %0 = vector.load %arg1[%c0, %c0_0] : memref<8x32xf32, #tpu.memory_space<vmem>>, vector<8x32xf32>
    %c0_1 = arith.constant 0 : index
    %c0_2 = arith.constant 0 : index
    %1 = vector.load %arg3[%c0_1, %c0_2] : memref<32x128xf32, #tpu.memory_space<vmem>>, vector<32x128xf32>
    %cst = arith.constant dense<0.000000e+00> : vector<8x128xf32>
    %2 = tpu.matmul %0, %1, %cst {dimension_numbers = #tpu.dot_dimension_numbers<[1], [0], [0], [1], [0, 0, 1, 1], [], []>} : vector<8x32xf32>, vector<32x128xf32>, vector<8x128xf32> -> vector<8x128xf32>
    %c0_3 = arith.constant 0 : index
    %c0_4 = arith.constant 0 : index
    %3 = vector.load %arg4[%c0_3, %c0_4] : memref<1x128xf32, #tpu.memory_space<vmem>>, vector<1x128xf32>
    %4 = vector.broadcast %3 : vector<1x128xf32> to vector<8x128xf32>
    %5 = arith.addf %2, %4 : vector<8x128xf32>
    %cst_5 = arith.constant 0.000000e+00 : f32
    %6 = vector.broadcast %cst_5 : f32 to vector<8x128xf32>
    %7 = arith.maximumf %5, %6 : vector<8x128xf32>
    %c0_6 = arith.constant 0 : index
    %c0_7 = arith.constant 0 : index
    %8 = vector.load %arg2[%c0_6, %c0_7] : memref<8x128xf32, #tpu.memory_space<vmem>>, vector<8x128xf32>
    %9 = arith.mulf %7, %8 : vector<8x128xf32>
    %c0_8 = arith.constant 0 : index
    %c0_9 = arith.constant 0 : index
    %10 = vector.load %arg5[%c0_8, %c0_9] : memref<128x128xf32, #tpu.memory_space<vmem>>, vector<128x128xf32>
    %cst_10 = arith.constant dense<0.000000e+00> : vector<8x128xf32>
    %11 = tpu.matmul %9, %10, %cst_10 {dimension_numbers = #tpu.dot_dimension_numbers<[1], [0], [0], [1], [0, 0, 1, 1], [], []>} : vector<8x128xf32>, vector<128x128xf32>, vector<8x128xf32> -> vector<8x128xf32>
    %c0_11 = arith.constant 0 : index
    %c0_12 = arith.constant 0 : index
    %12 = vector.load %arg6[%c0_11, %c0_12] : memref<1x128xf32, #tpu.memory_space<vmem>>, vector<1x128xf32>
    %13 = vector.broadcast %12 : vector<1x128xf32> to vector<8x128xf32>
    %14 = arith.addf %11, %13 : vector<8x128xf32>
    %c0_13 = arith.constant 0 : index
    %c0_14 = arith.constant 0 : index
    %15 = vector.load %arg7[%c0_13, %c0_14] : memref<8x128xf32, #tpu.memory_space<vmem>>, vector<8x128xf32>
    tpu.vector_store %arg7[%c0_13, %c0_14], %14 {strides = array<i32>} : memref<8x128xf32, #tpu.memory_space<vmem>>, vector<8x128xf32>,
    return
  }
  func.func @transform_0(%arg0: i32) -> (i32, i32) {
    %c0_i32 = arith.constant 0 : i32
    %c0_i32_0 = arith.constant 0 : i32
    return %arg0, %c0_i32 : i32, i32
  }
  func.func @transform_1(%arg0: i32) -> (i32, i32) {
    %c0_i32 = arith.constant 0 : i32
    %c0_i32_0 = arith.constant 0 : i32
    return %arg0, %c0_i32 : i32, i32
  }
  func.func @transform_2(%arg0: i32) -> (i32, i32) {
    %c0_i32 = arith.constant 0 : i32
    %c0_i32_0 = arith.constant 0 : i32
    %c0_i32_1 = arith.constant 0 : i32
    return %c0_i32, %c0_i32_0 : i32, i32
  }
  func.func @transform_3(%arg0: i32) -> (i32, i32) {
    %c0_i32 = arith.constant 0 : i32
    %c0_i32_0 = arith.constant 0 : i32
    %c0_i32_1 = arith.constant 0 : i32
    return %c0_i32, %c0_i32_0 : i32, i32
  }
  func.func @transform_4(%arg0: i32) -> (i32, i32) {
    %c0_i32 = arith.constant 0 : i32
    %c0_i32_0 = arith.constant 0 : i32
    %c0_i32_1 = arith.constant 0 : i32
    return %c0_i32, %c0_i32_0 : i32, i32
  }
  func.func @transform_5(%arg0: i32) -> (i32, i32) {
    %c0_i32 = arith.constant 0 : i32
    %c0_i32_0 = arith.constant 0 : i32
    %c0_i32_1 = arith.constant 0 : i32
    return %c0_i32, %c0_i32_0 : i32, i32
  }
  func.func @transform_6(%arg0: i32) -> (i32, i32) {
    %c0_i32 = arith.constant 0 : i32
    %c0_i32_0 = arith.constant 0 : i32
    return %arg0, %c0_i32 : i32, i32
  }
}

</mosaic_0001>

<llo_original>
// kernel: tpu_custom_call.1
$region0: #{tpu_custom_call.1}
  #allocation0 [shape = 'u32[]', space=smem, size = 0x4, offset = 0x4, fixed_abs, tag = 'smem constant byte address 0x4 - core index']
  #allocation1 [shape = 'u32[144,128]{1,0:T(1,128)}', space=vmem, size = 0x12000, scoped, tag = 'internal scratch']
  %s0 = inlined_call_operand.hbm [shape: f32[8,32], index: 0, kind: input, shape index: {}]
  %s1 = inlined_call_operand.hbm [shape: f32[8,128], index: 1, kind: input, shape index: {}]
  %s2 = inlined_call_operand.hbm [shape: f32[32,128], index: 2, kind: input, shape index: {}]
  %s3 = inlined_call_operand.vmem [shape: f32[1,128], index: 3, kind: input, shape index: {}]
  %s4 = inlined_call_operand.hbm [shape: f32[128,128], index: 4, kind: input, shape index: {}]
  %s5 = inlined_call_operand.vmem [shape: f32[1,128], index: 5, kind: input, shape index: {}]
  %s6 = inlined_call_operand.hbm [shape: f32[8,128], index: 6, kind: output, shape index: {}]
  %s7 = sld [smem:[#allocation0]]
  $region50: #{tpu_custom_call.1} parent=0
    _
  %s9 = ssub.s32 1, %s7
  %s10 = scalar_select 0, %s9, %s7
  $region1: #{tpu_custom_call.1} parent=0
    #allocation2 [shape = 'u8[4096]{0}', space=vmem, size = 0x1000, scoped, tag = 'input window, operand 0, single buffered']
    #allocation3 [shape = 's32[1]{0}', space=sflag, size = 0x4, scoped, tag = 'scoped memory for tpu_custom_call.1']
    #allocation4 [shape = 's32[1]{0}', space=sflag, size = 0x4, scoped, tag = 'scoped memory for tpu_custom_call.1']
    #allocation5 [shape = 'u8[4096]{0}', space=vmem, size = 0x1000, scoped, tag = 'input window, operand 1, single buffered']
    #allocation6 [shape = 's32[1]{0}', space=sflag, size = 0x4, scoped, tag = 'scoped memory for tpu_custom_call.1']
    #allocation7 [shape = 'u8[16384]{0}', space=vmem, size = 0x4000, scoped, tag = 'input window, operand 2, single buffered']
    #allocation8 [shape = 'u8[65536]{0}', space=vmem, size = 0x10000, scoped, tag = 'input window, operand 4, single buffered']
    #allocation9 [shape = 's32[1]{0}', space=sflag, size = 0x4, scoped, tag = 'scoped memory for tpu_custom_call.1']
    #allocation10 [shape = 'u8[4096]{0}', space=vmem, size = 0x1000, scoped, tag = 'output window, operand 0, single buffered']
    %11 = vsyncpa [#allocation3], 0
    %12 = vsyncpa [#allocation6], 0
    %13 = vsyncpa [#allocation9], 0
    %14 = vsyncpa [#allocation4], 0
    // Predicated region
    $region2: #{tpu_custom_call.1} parent=1 // pred_check
      _
    $region3: #{tpu_custom_call.1} parent=1 // pred_check_branch
      %16 = sbr.rel (0) target = $region5
    $region4: #{tpu_custom_call.1} parent=1 // pred_region
      %s18 = ssub.s32 128, 128
      %19 = vsyncadd [#allocation3], %s18
      %s21 = sshll.u32 [#allocation2], 4
      %s22 = int_to_ptr.vmem [resolvable:$true] %s21
      %24 = dma.hbm_to_vmem [thread:$0]  %s0, 128, %s22, [#allocation3]
    $region5: #{tpu_custom_call.1} parent=1 // pred_fallthru
      _
    // Predicated region
    $region6: #{tpu_custom_call.1} parent=1 // pred_check
      _
    $region7: #{tpu_custom_call.1} parent=1 // pred_check_branch
      %26 = sbr.rel (0) target = $region9
    $region8: #{tpu_custom_call.1} parent=1 // pred_region
      %s28 = ssub.s32 128, 128
      %29 = vsyncadd [#allocation6], %s28
      %s31 = sshll.u32 [#allocation5], 4
      %s32 = int_to_ptr.vmem [resolvable:$true] %s31
      %34 = dma.hbm_to_vmem [thread:$0]  %s1, 128, %s32, [#allocation6]
    $region9: #{tpu_custom_call.1} parent=1 // pred_fallthru
      _
    // Predicated region
    $region10: #{tpu_custom_call.1} parent=1 // pred_check
      _
    $region11: #{tpu_custom_call.1} parent=1 // pred_check_branch
      %36 = sbr.rel (0) target = $region13
    $region12: #{tpu_custom_call.1} parent=1 // pred_region
      %s38 = ssub.s32 512, 512
      %39 = vsyncadd [#allocation6], %s38
      %s40 = sshll.u32 [#allocation7], 4
      %s41 = int_to_ptr.vmem [resolvable:$true] %s40
      %46 = dma.hbm_to_vmem [thread:$0]  %s2, 512, %s41, [#allocation6], 128, 128, 8
    $region13: #{tpu_custom_call.1} parent=1 // pred_fallthru
      _
    // Predicated region
    $region14: #{tpu_custom_call.1} parent=1 // pred_check
      _
    $region15: #{tpu_custom_call.1} parent=1 // pred_check_branch
      %48 = sbr.rel (0) target = $region17
    $region16: #{tpu_custom_call.1} parent=1 // pred_region
      _
    $region17: #{tpu_custom_call.1} parent=1 // pred_fallthru
      _
    // Predicated region
    $region18: #{tpu_custom_call.1} parent=1 // pred_check
      _
    $region19: #{tpu_custom_call.1} parent=1 // pred_check_branch
      %50 = sbr.rel (0) target = $region21
    $region20: #{tpu_custom_call.1} parent=1 // pred_region
      %s52 = ssub.s32 2048, 2048
      %53 = vsyncadd [#allocation9], %s52
      %s54 = sshll.u32 [#allocation8], 4
      %s55 = int_to_ptr.vmem [resolvable:$true] %s54
      %60 = dma.hbm_to_vmem [thread:$0]  %s4, 2048, %s55, [#allocation9], 128, 128, 8
    $region21: #{tpu_custom_call.1} parent=1 // pred_fallthru
      _
    // Predicated region
    $region22: #{tpu_custom_call.1} parent=1 // pred_check
      _
    $region23: #{tpu_custom_call.1} parent=1 // pred_check_branch
      %62 = sbr.rel (0) target = $region25
    $region24: #{tpu_custom_call.1} parent=1 // pred_region
      _
    $region25: #{tpu_custom_call.1} parent=1 // pred_fallthru
      _
    // Predicated region
    $region26: #{tpu_custom_call.1} parent=1 // pred_check
      _
    $region27: #{tpu_custom_call.1} parent=1 // pred_check_branch
      %64 = sbr.rel (0) target = $region29
    $region28: #{tpu_custom_call.1} parent=1 // pred_region
      %65 = dma.done [#allocation3], 128
    $region29: #{tpu_custom_call.1} parent=1 // pred_fallthru
      _
    // Predicated region
    $region30: #{tpu_custom_call.1} parent=1 // pred_check
      _
    $region31: #{tpu_custom_call.1} parent=1 // pred_check_branch
      %67 = sbr.rel (0) target = $region33
    $region32: #{tpu_custom_call.1} parent=1 // pred_region
      %68 = dma.done [#allocation6], 128
    $region33: #{tpu_custom_call.1} parent=1 // pred_fallthru
      _
    // Predicated region
    $region34: #{tpu_custom_call.1} parent=1 // pred_check
      _
    $region35: #{tpu_custom_call.1} parent=1 // pred_check_branch
      %70 = sbr.rel (0) target = $region37
    $region36: #{tpu_custom_call.1} parent=1 // pred_region
      %71 = dma.done [#allocation6], 512
    $region37: #{tpu_custom_call.1} parent=1 // pred_fallthru
      _
    // Predicated region
    $region38: #{tpu_custom_call.1} parent=1 // pred_check
      _
    $region39: #{tpu_custom_call.1} parent=1 // pred_check_branch
      %73 = sbr.rel (0) target = $region41
    $region40: #{tpu_custom_call.1} parent=1 // pred_region
      %74 = dma.done [#allocation9], 2048
    $region41: #{tpu_custom_call.1} parent=1 // pred_fallthru
      _
    %v75 = vld [vmem:[#allocation2] sm:$0xff]
    %v76 = vld [vmem:[#allocation7] sm:$0xff]
    %v77 = vld [vmem:[#allocation7 + $0x8] sm:$0xff]
    %v78 = vld [vmem:[#allocation7 + $0x10] sm:$0xff]
    %v79 = vld [vmem:[#allocation7 + $0x18] sm:$0xff]
    %v80 = vld [vmem:[%s3] sm:$0x1]
    %v82 = vlaneseq
    %v83 = vshrl.u32 %v82, 7
    %v84 = vsub.s32 0, %v83
    %v85 = vrot.slane %v80, %v84
    %vm87 = vcmask 261120
    %v89 = vsel %vm87, %v75, 0
    %91 = vmatprep.subr.mxu0 0.0
    %92 = vmatpush1.msra.mxu0 0.0
    %93 = vmatprep.subr.mxu0 0.0
    %94 = vmatpush1.msra.mxu0 0.0
    %95 = vmatprep.subr.mxu0 0.0
    %96 = vmatpush1.msra.mxu0 0.0
    %97 = vmatprep.subr.mxu0 0.0
    %98 = vmatpush1.msra.mxu0 0.0
    %99 = vmatprep.subr.mxu0 0.0
    %100 = vmatpush1.msra.mxu0 0.0
    %101 = vmatprep.subr.mxu0 0.0
    %102 = vmatpush1.msra.mxu0 0.0
    %103 = vmatprep.subr.mxu0 0.0
    %104 = vmatpush1.msra.mxu0 0.0
    %105 = vmatprep.subr.mxu0 0.0
    %106 = vmatpush1.msra.mxu0 0.0
    %107 = vmatprep.subr.mxu0 0.0
    %108 = vmatpush1.msra.mxu0 0.0
    %109 = vmatprep.subr.mxu0 0.0
    %110 = vmatpush1.msra.mxu0 0.0
    %111 = vmatprep.subr.mxu0 0.0
    %112 = vmatpush1.msra.mxu0 0.0
    %113 = vmatprep.subr.mxu0 0.0
    %114 = vmatpush1.msra.mxu0 0.0
    %115 = vmatprep.subr.mxu0 0.0
    %116 = vmatpush1.msra.mxu0 %v79
    %117 = vmatprep.subr.mxu0 0.0
    %118 = vmatpush1.msra.mxu0 %v78
    %119 = vmatprep.subr.mxu0 0.0
    %120 = vmatpush1.msra.mxu0 %v77
    %121 = vmatprep.subr.mxu0 0.0
    %122 = vmatpush1.msra.mxu0 %v76
    %123 = vmatprep.subr.mxu0 0.0
    %124 = vmatpush2.msra.mxu0 0.0
    %125 = vmatprep.subr.mxu0 0.0
    %126 = vmatpush2.msra.mxu0 0.0
    %127 = vmatprep.subr.mxu0 0.0
    %128 = vmatpush2.msra.mxu0 0.0
    %129 = vmatprep.subr.mxu0 0.0
    %130 = vmatpush2.msra.mxu0 0.0
    %131 = vmatprep.subr.mxu0 0.0
    %132 = vmatpush2.msra.mxu0 0.0
    %133 = vmatprep.subr.mxu0 0.0
    %134 = vmatpush2.msra.mxu0 0.0
    %135 = vmatprep.subr.mxu0 0.0
    %136 = vmatpush2.msra.mxu0 0.0
    %137 = vmatprep.subr.mxu0 0.0
    %138 = vmatpush2.msra.mxu0 0.0
    %139 = vmatprep.subr.mxu0 0.0
    %140 = vmatpush2.msra.mxu0 0.0
    %141 = vmatprep.subr.mxu0 0.0
    %142 = vmatpush2.msra.mxu0 0.0
    %143 = vmatprep.subr.mxu0 0.0
    %144 = vmatpush2.msra.mxu0 0.0
    %145 = vmatprep.subr.mxu0 0.0
    %146 = vmatpush2.msra.mxu0 0.0
    %147 = vmatprep.subr.mxu0 0.0
    %148 = vmatpush2.msra.mxu0 0.0
    %149 = vmatprep.subr.mxu0 0.0
    %150 = vmatpush2.msra.mxu0 0.0
    %151 = vmatprep.subr.mxu0 0.0
    %152 = vmatpush2.msra.mxu0 0.0
    %153 = vmatprep.subr.mxu0 0.0
    %154 = vmatpush2.msra.mxu0 0.0
    %155 = vmatprep.mubr.f32.mxu0 0.0
    %156 = vmatmul.mubr.f32.gmra.mxu0 %v89
    %v157 = vpop.f32.mrf.mxu0
    %v158 = vadd.f32 %v85, %v157
    %v159 = vpop.f32.mrf.mxu0
    %160 = vdwg.mxu0
    %v161 = vmax.f32 %v158, 0.0
    %v162 = vld [vmem:[#allocation5] sm:$0xff]
    %v163 = vmul.f32 %v161, %v162
    %v164 = vld [vmem:[#allocation8] sm:$0xff]
    %v165 = vld [vmem:[#allocation8 + $0x8] sm:$0xff]
    %v166 = vld [vmem:[#allocation8 + $0x10] sm:$0xff]
    %v167 = vld [vmem:[#allocation8 + $0x18] sm:$0xff]
    %v168 = vld [vmem:[#allocation8 + $0x20] sm:$0xff]
    %v169 = vld [vmem:[#allocation8 + $0x28] sm:$0xff]
    %v170 = vld [vmem:[#allocation8 + $0x30] sm:$0xff]
    %v171 = vld [vmem:[#allocation8 + $0x38] sm:$0xff]
    %v172 = vld [vmem:[#allocation8 + $0x40] sm:$0xff]
    %v173 = vld [vmem:[#allocation8 + $0x48] sm:$0xff]
    %v174 = vld [vmem:[#allocation8 + $0x50] sm:$0xff]
    %v175 = vld [vmem:[#allocation8 + $0x58] sm:$0xff]
    %v176 = vld [vmem:[#allocation8 + $0x60] sm:$0xff]
    %v177 = vld [vmem:[#allocation8 + $0x68] sm:$0xff]
    %v178 = vld [vmem:[#allocation8 + $0x70] sm:$0xff]
    %v179 = vld [vmem:[#allocation8 + $0x78] sm:$0xff]
    %v180 = vld [vmem:[%s5] sm:$0x1]
    %v182 = vlaneseq
    %v183 = vshrl.u32 %v182, 7
    %v184 = vsub.s32 0, %v183
    %v185 = vrot.slane %v180, %v184
    %187 = vmatprep.subr.mxu0 0.0
    %188 = vmatpush1.msra.mxu0 %v179
    %189 = vmatprep.subr.mxu0 0.0
    %190 = vmatpush1.msra.mxu0 %v178
    %191 = vmatprep.subr.mxu0 0.0
    %192 = vmatpush1.msra.mxu0 %v177
    %193 = vmatprep.subr.mxu0 0.0
    %194 = vmatpush1.msra.mxu0 %v176
    %195 = vmatprep.subr.mxu0 0.0
    %196 = vmatpush1.msra.mxu0 %v175
    %197 = vmatprep.subr.mxu0 0.0
    %198 = vmatpush1.msra.mxu0 %v174
    %199 = vmatprep.subr.mxu0 0.0
    %200 = vmatpush1.msra.mxu0 %v173
    %201 = vmatprep.subr.mxu0 0.0
    %202 = vmatpush1.msra.mxu0 %v172
    %203 = vmatprep.subr.mxu0 0.0
    %204 = vmatpush1.msra.mxu0 %v171
    %205 = vmatprep.subr.mxu0 0.0
    %206 = vmatpush1.msra.mxu0 %v170
    %207 = vmatprep.subr.mxu0 0.0
    %208 = vmatpush1.msra.mxu0 %v169
    %209 = vmatprep.subr.mxu0 0.0
    %210 = vmatpush1.msra.mxu0 %v168
    %211 = vmatprep.subr.mxu0 0.0
    %212 = vmatpush1.msra.mxu0 %v167
    %213 = vmatprep.subr.mxu0 0.0
    %214 = vmatpush1.msra.mxu0 %v166
    %215 = vmatprep.subr.mxu0 0.0
    %216 = vmatpush1.msra.mxu0 %v165
    %217 = vmatprep.subr.mxu0 0.0
    %218 = vmatpush1.msra.mxu0 %v164
    %219 = vmatprep.subr.mxu0 0.0
    %220 = vmatpush2.msra.mxu0 0.0
    %221 = vmatprep.subr.mxu0 0.0
    %222 = vmatpush2.msra.mxu0 0.0
    %223 = vmatprep.subr.mxu0 0.0
    %224 = vmatpush2.msra.mxu0 0.0
    %225 = vmatprep.subr.mxu0 0.0
    %226 = vmatpush2.msra.mxu0 0.0
    %227 = vmatprep.subr.mxu0 0.0
    %228 = vmatpush2.msra.mxu0 0.0
    %229 = vmatprep.subr.mxu0 0.0
    %230 = vmatpush2.msra.mxu0 0.0
    %231 = vmatprep.subr.mxu0 0.0
    %232 = vmatpush2.msra.mxu0 0.0
    %233 = vmatprep.subr.mxu0 0.0
    %234 = vmatpush2.msra.mxu0 0.0
    %235 = vmatprep.subr.mxu0 0.0
    %236 = vmatpush2.msra.mxu0 0.0
    %237 = vmatprep.subr.mxu0 0.0
    %238 = vmatpush2.msra.mxu0 0.0
    %239 = vmatprep.subr.mxu0 0.0
    %240 = vmatpush2.msra.mxu0 0.0
    %241 = vmatprep.subr.mxu0 0.0
    %242 = vmatpush2.msra.mxu0 0.0
    %243 = vmatprep.subr.mxu0 0.0
    %244 = vmatpush2.msra.mxu0 0.0
    %245 = vmatprep.subr.mxu0 0.0
    %246 = vmatpush2.msra.mxu0 0.0
    %247 = vmatprep.subr.mxu0 0.0
    %248 = vmatpush2.msra.mxu0 0.0
    %249 = vmatprep.subr.mxu0 0.0
    %250 = vmatpush2.msra.mxu0 0.0
    %251 = vmatprep.mubr.f32.mxu0 0.0
    %252 = vmatmul.mubr.f32.gmra.mxu0 %v163
    %v253 = vpop.f32.mrf.mxu0
    %v254 = vadd.f32 %v185, %v253
    %v255 = vpop.f32.mrf.mxu0
    %256 = vdwg.mxu0
    %257 = vst [vmem:[#allocation10] sm:$0xff] %v254
    // Predicated region
    $region42: #{tpu_custom_call.1} parent=1 // pred_check
      _
    $region43: #{tpu_custom_call.1} parent=1 // pred_check_branch
      %259 = sbr.rel (0) target = $region45
    $region44: #{tpu_custom_call.1} parent=1 // pred_region
      %s261 = ssub.s32 128, 128
      %262 = vsyncadd [#allocation4], %s261
      %s264 = sshll.u32 [#allocation10], 4
      %s265 = int_to_ptr.vmem [resolvable:$true] %s264
      %267 = dma.vmem_to_hbm [thread:$0]  %s265, 128, %s6, [#allocation4]
    $region45: #{tpu_custom_call.1} parent=1 // pred_fallthru
      _
    // Predicated region
    $region46: #{tpu_custom_call.1} parent=1 // pred_check
      _
    $region47: #{tpu_custom_call.1} parent=1 // pred_check_branch
      %269 = sbr.rel (0) target = $region49
    $region48: #{tpu_custom_call.1} parent=1 // pred_region
      %270 = dma.done [#allocation4], 128
    $region49: #{tpu_custom_call.1} parent=1 // pred_fallthru
      _
    %271 = vsyncpa [#allocation3], 1
    %272 = vsyncpa [#allocation6], 1
    %273 = vsyncpa [#allocation9], 1
    %274 = vsyncpa [#allocation4], 1

</llo_original>
